<compile_context>
chip_gen: v5e
topology: v5e:2x2
jax: 0.10.0
libtpu: 0.0.40
codegen_flags: <defaults>
</compile_context>

<pallas_src>
import functools

import jax
import jax.numpy as jnp
from jax.experimental import pallas as pl
from jax.experimental.pallas import tpu as pltpu

NEG_SLOPE = 0.01  # F.leaky_relu default negative_slope


def _round_up(x, m):
    return ((x + m - 1) // m) * m


def _leaky(v):
    # == leaky_relu for 0 < NEG_SLOPE < 1; mul+max instead of cmp+mul+select.
    return jnp.maximum(v, NEG_SLOPE * v)


def _physical_vmem_bytes():
    try:
        return int(pltpu.get_tpu_info().vmem_capacity_bytes)
    except Exception:
        return 64 << 20  # conservative (v7x-sized) fallback


# ---------------------------------------------------------------------------
# Pallas kernels
# ---------------------------------------------------------------------------
def _fc_block_kernel_shortcut(x_ref, wcat_ref, bcat_ref, w2_ref, b2_ref, o_ref,
                              *, n_out):
    """in_features != out_features -> residual goes through the shortcut Linear.

    wcat = [W1^T | Ws^T]  (K, 2*N) so x hits the MXU once for fc1 + shortcut.
    """
    x = x_ref[...].astype(wcat_ref.dtype)            # cast to bf16 in-kernel
    hr = jnp.dot(x, wcat_ref[...],
                 preferred_element_type=jnp.float32) + bcat_ref[...]   # f32
    h = _leaky(hr[:, :n_out])                         # fc1 output, activated
    res = hr[:, n_out:]                               # shortcut(x), no activation
    out = jnp.dot(h.astype(w2_ref.dtype), w2_ref[...],
                  preferred_element_type=jnp.float32) + b2_ref[...] + res
    o_ref[...] = _leaky(out).astype(o_ref.dtype)


def _fc_block_kernel_identity(x_ref, w1_ref, b1_ref, w2_ref, b2_ref, o_ref,
                              *, n_real):
    """in_features == out_features -> identity residual."""
    xc = x_ref[...].astype(w1_ref.dtype)              # bf16 MXU operand
    h = _leaky(jnp.dot(xc, w1_ref[...],
                       preferred_element_type=jnp.float32) + b1_ref[...])
    out = jnp.dot(h.astype(w2_ref.dtype), w2_ref[...],
                  preferred_element_type=jnp.float32) + b2_ref[...]
    xf = x_ref[...].astype(jnp.float32)               # full-precision residual
    if n_real == out.shape[1]:
        o_ref[...] = _leaky(out + xf).astype(o_ref.dtype)
    else:
        # Residual is narrower than the lane-padded output: write only the real
        # columns (padded columns are sliced off in the wrapper).
        o_ref[:, :n_real] = _leaky(out[:, :n_real] + xf).astype(o_ref.dtype)


# ---------------------------------------------------------------------------
# Spectral normalization (parameter setup, plain JAX glue)
# ---------------------------------------------------------------------------
def spectral_normalize(w, key, n_power_iterations=20, eps=1e-12):
    """w: (out_features, in_features).  Returns w / sigma like utils.spectral_norm."""
    out_f, _ = w.shape
    u = jax.random.normal(key, (out_f,), dtype=w.dtype)
    u = u / (jnp.linalg.norm(u) + eps)

    def body(_, u):
        v = w.T @ u
        v = v / (jnp.linalg.norm(v) + eps)
        u = w @ v
        u = u / (jnp.linalg.norm(u) + eps)
        return u

    u = jax.lax.fori_loop(0, n_power_iterations, body, u)
    v = w.T @ u
    v = v / (jnp.linalg.norm(v) + eps)
    sigma = u @ (w @ v)
    return w / sigma


def make_params(key, in_features, out_features, dtype=jnp.float32):
    """Deterministic synthetic parameters matching the module's __init__ shapes."""
    keys = jax.random.split(key, 9)

    def linear_init(kw, kb, ku, fan_in, fan_out):
        bound = 1.0 / jnp.sqrt(fan_in)
        w = jax.random.uniform(kw, (fan_out, fan_in), dtype, -bound, bound)
        b = jax.random.uniform(kb, (fan_out,), dtype, -bound, bound)
        w = spectral_normalize(w, ku)
        return w, b

    w1, b1 = linear_init(keys[0], keys[1], keys[2], in_features, out_features)
    w2, b2 = linear_init(keys[3], keys[4], keys[5], out_features, out_features)
    ws, bs = linear_init(keys[6], keys[7], keys[8], in_features, out_features)
    return dict(w1=w1, b1=b1, w2=w2, b2=b2, ws=ws, bs=bs)


# ---------------------------------------------------------------------------
# One-time parameter preparation (hoisted out of the forward path)
# ---------------------------------------------------------------------------
def prepare_params(params, in_features, out_features,
                   compute_dtype=jnp.bfloat16, lane_pad=128):
    """Transpose to (in, out), cast MXU operands to bf16, pad the OUTPUT feature
    axis to a lane multiple, and (shortcut case) concatenate fc1 + shortcut
    weights along the out axis.  The contraction (K) axis is NOT padded."""
    n_pad = _round_up(out_features, lane_pad)

    def pad_cols(w_t):
        return jnp.pad(w_t.astype(compute_dtype),
                       ((0, 0), (0, n_pad - w_t.shape[1])))

    def pad_b(b):
        return jnp.pad(b.astype(jnp.float32),
                       (0, n_pad - out_features)).reshape(1, n_pad)

    w1_t = pad_cols(params["w1"].T)                               # (K, Np)
    w2_t = jnp.pad(params["w2"].T.astype(compute_dtype),          # (Np, Np)
                   ((0, n_pad - out_features), (0, n_pad - out_features)))
    b1 = pad_b(params["b1"])
    b2 = pad_b(params["b2"])

    prepared = dict(w2_t=w2_t, b2=b2, n_pad=n_pad,
                    identity=(in_features == out_features),
                    compute_dtype=compute_dtype)
    if prepared["identity"]:
        prepared["w1_t"] = w1_t
        prepared["b1"] = b1
    else:
        ws_t = pad_cols(params["ws"].T)
        bs = pad_b(params["bs"])
        prepared["wcat_t"] = jnp.concatenate([w1_t, ws_t], axis=1)  # (K, 2Np)
        prepared["bcat"] = jnp.concatenate([b1, bs], axis=1)        # (1, 2Np)
    return prepared


# ---------------------------------------------------------------------------
# Forward pass
# ---------------------------------------------------------------------------
def spectral_fc_block(x, prepared, in_features, out_features, *,
                      tm_max=1024, out_dtype=None):
    """Forward pass of SpectralNormalizedFullyConnectedBlock via one Pallas kernel."""
    batch = x.shape[0]
    out_dtype = x.dtype if out_dtype is None else out_dtype
    n_pad = prepared["n_pad"]
    identity = prepared["identity"]

    # Batch tile: multiple of 16 (bf16 packs 16 sublanes); ragged tail handled by
    # grid = cdiv + masked OOB output writes.
    tm = min(_round_up(tm_max, 16), max(16, _round_up(batch, 16)))
    grid = (pl.cdiv(batch, tm),)

    # x is fed unpadded: last block dim == full array dim is always legal.
    # (On v7x, if the x/out DMA is still exposed, bump to pl.Buffered(3).)
    x_spec = pl.BlockSpec((tm, in_features), lambda i: (i, 0))
    o_spec = pl.BlockSpec((tm, n_pad), lambda i: (i, 0))

    # ---- VMEM budget: <= ~80% of physical VMEM (51 MiB v7x, ~102 MiB v5e/v6e).
    budget = int(_physical_vmem_bytes() * 0.8)
    c = jnp.dtype(prepared["compute_dtype"]).itemsize
    if identity:
        w_bytes = (in_features * n_pad + n_pad * n_pad) * c + 2 * n_pad * 4
    else:
        w_bytes = (in_features * 2 * n_pad + n_pad * n_pad) * c + 3 * n_pad * 4
    io_bytes = 2 * tm * (in_features * x.dtype.itemsize
                         + n_pad * jnp.dtype(out_dtype).itemsize)

    def run(weight_mode):
        spec_kwargs = {} if weight_mode is None else {"pipeline_mode": weight_mode}

        def resident(shape):
            # Same block index every grid step -> fetched once, stays in VMEM.
            return pl.BlockSpec(shape, lambda i: (0, 0), **spec_kwargs)

        w_copies = 1 if weight_mode is not None else 2
        est = w_copies * w_bytes + io_bytes
        vmem_limit = int(min(budget, max(32 << 20, 2 * est)))
        compiler_params = pltpu.CompilerParams(
            dimension_semantics=("parallel",),   # shards batch grid on v7x 2-TC
            vmem_limit_bytes=vmem_limit,
        )

        if identity:
            kernel = functools.partial(_fc_block_kernel_identity,
                                       n_real=out_features)
            args = (x, prepared["w1_t"], prepared["b1"],
                    prepared["w2_t"], prepared["b2"])
            in_specs = [x_spec,
                        resident((in_features, n_pad)),
                        resident((1, n_pad)),
                        resident((n_pad, n_pad)),
                        resident((1, n_pad))]
        else:
            kernel = functools.partial(_fc_block_kernel_shortcut, n_out=n_pad)
            args = (x, prepared["wcat_t"], prepared["bcat"],
                    prepared["w2_t"], prepared["b2"])
            in_specs = [x_spec,
                        resident((in_features, 2 * n_pad)),
                        resident((1, 2 * n_pad)),
                        resident((n_pad, n_pad)),
                        resident((1, n_pad))]

        return pl.pallas_call(
            kernel,
            out_shape=jax.ShapeDtypeStruct((batch, n_pad), out_dtype),
            grid=grid,
            in_specs=in_specs,
            out_specs=o_spec,
            compiler_params=compiler_params,
        )(*args)

    try:
        out_p = run(pl.Buffered(1))        # single-buffered resident weights
        out_p.block_until_ready()
    except Exception:
        # Fallback if this JAX/Mosaic build rejects Buffered(1) resident specs.
        out_p = run(None)

    if n_pad == out_features:
        return out_p
    return out_p[:, :out_features]


# ---------------------------------------------------------------------------
# Reference (plain JAX, f32) for correctness check
# ---------------------------------------------------------------------------
def reference_forward(x, params, in_features, out_features):
    out = _leaky(x @ params["w1"].T + params["b1"])
    out = out @ params["w2"].T + params["b2"]
    residual = x if in_features == out_features else x @ params["ws"].T + params["bs"]
    return _leaky(out + residual)


if __name__ == "__main__":
    key = jax.random.PRNGKey(0)
    k_x, k_p, k_x2, k_p2, k_x3 = jax.random.split(key, 5)

    # --- shortcut path: in_features != out_features, single tile ---
    batch, in_features, out_features = 8, 32, 64
    x = jax.random.normal(k_x, (batch, in_features), dtype=jnp.float32)
    params = make_params(k_p, in_features, out_features)
    prepared = prepare_params(params, in_features, out_features)

    out = jax.block_until_ready(
        spectral_fc_block(x, prepared, in_features, out_features))
    ref = reference_forward(x, params, in_features, out_features)
    assert out.shape == (batch, out_features)
    err = float(jnp.max(jnp.abs(out - ref)))
    assert jnp.allclose(out, ref, atol=3e-2, rtol=3e-2), (
        "shortcut path mismatch vs reference, max abs err %e" % err)

    # --- identity path: in_features == out_features ---
    batch2, feats = 16, 64
    x2 = jax.random.normal(k_x2, (batch2, feats), dtype=jnp.float32)
    params2 = make_params(k_p2, feats, feats)
    prepared2 = prepare_params(params2, feats, feats)

    out2 = jax.block_until_ready(spectral_fc_block(x2, prepared2, feats, feats))
    ref2 = reference_forward(x2, params2, feats, feats)
    assert out2.shape == (batch2, feats)
    err2 = float(jnp.max(jnp.abs(out2 - ref2)))
    assert jnp.allclose(out2, ref2, atol=3e-2, rtol=3e-2), (
        "identity path mismatch vs reference, max abs err %e" % err2)

    # --- multi-tile grid + ragged batch tail (grid=cdiv, masked OOB writes) ---
    batch3 = 40
    x3 = jax.random.normal(k_x3, (batch3, in_features), dtype=jnp.float32)
    out3 = jax.block_until_ready(
        spectral_fc_block(x3, prepared, in_features, out_features, tm_max=16))
    ref3 = reference_forward(x3, params, in_features, out_features)
    assert out3.shape == (batch3, out_features)
    err3 = float(jnp.max(jnp.abs(out3 - ref3)))
    assert jnp.allclose(out3, ref3, atol=3e-2, rtol=3e-2), (
        "ragged-batch path mismatch vs reference, max abs err %e" % err3)

    # --- bf16 output path (cuts output HBM traffic) ---
    out4 = jax.block_until_ready(
        spectral_fc_block(x, prepared, in_features, out_features,
                          out_dtype=jnp.bfloat16))
    assert out4.dtype == jnp.bfloat16 and out4.shape == (batch, out_features)
    assert bool(jnp.all(jnp.isfinite(out4.astype(jnp.float32))))

    print("KERNEL_OK")
</pallas_src>

<mosaic_0001>
module attributes {stable_mosaic.version = 11 : i64} {
  func.func @_fc_block_kernel_shortcut(%arg0: i32, %arg1: memref<16x32xf32, #tpu.memory_space<vmem>>, %arg2: memref<32x256xbf16, #tpu.memory_space<vmem>>, %arg3: memref<1x256xf32, #tpu.memory_space<vmem>>, %arg4: memref<128x128xbf16, #tpu.memory_space<vmem>>, %arg5: memref<1x128xf32, #tpu.memory_space<vmem>>, %arg6: memref<16x128xf32, #tpu.memory_space<vmem>>) attributes {dimension_semantics = [#tpu.dimension_semantics<parallel>], iteration_bounds = array<i64: 1>, scalar_prefetch = 0 : i64, scratch_operands = 0 : i64, tpu.core_type = #tpu.core_type<tc>, window_params = [{transform_indices = @transform_0, window_bounds = array<i64: 16, 32>}, {pipeline_mode = #tpu.pipeline_mode<synchronous>, transform_indices = @transform_1, window_bounds = array<i64: 32, 256>}, {pipeline_mode = #tpu.pipeline_mode<synchronous>, transform_indices = @transform_2, window_bounds = array<i64: 1, 256>}, {pipeline_mode = #tpu.pipeline_mode<synchronous>, transform_indices = @transform_3, window_bounds = array<i64: 128, 128>}, {pipeline_mode = #tpu.pipeline_mode<synchronous>, transform_indices = @transform_4, window_bounds = array<i64: 1, 128>}, {transform_indices = @transform_5, window_bounds = array<i64: 16, 128>}]} {
    %c0 = arith.constant 0 : index
    %c0_0 = arith.constant 0 : index
    %0 = vector.load %arg1[%c0, %c0_0] : memref<16x32xf32, #tpu.memory_space<vmem>>, vector<16x32xf32>
    %1 = arith.truncf %0 : vector<16x32xf32> to vector<16x32xbf16>
    %c0_1 = arith.constant 0 : index
    %c0_2 = arith.constant 0 : index
    %2 = vector.load %arg2[%c0_1, %c0_2] : memref<32x256xbf16, #tpu.memory_space<vmem>>, vector<32x256xbf16>
    %cst = arith.constant dense<0.000000e+00> : vector<16x256xf32>
    %3 = tpu.matmul %1, %2, %cst {dimension_numbers = #tpu.dot_dimension_numbers<[1], [0], [0], [1], [0, 0, 1, 1], [], []>} : vector<16x32xbf16>, vector<32x256xbf16>, vector<16x256xf32> -> vector<16x256xf32>
    %c0_3 = arith.constant 0 : index
    %c0_4 = arith.constant 0 : index
    %4 = vector.load %arg3[%c0_3, %c0_4] : memref<1x256xf32, #tpu.memory_space<vmem>>, vector<1x256xf32>
    %5 = vector.broadcast %4 : vector<1x256xf32> to vector<16x256xf32>
    %6 = arith.addf %3, %5 : vector<16x256xf32>
    %7 = vector.extract_strided_slice %6 {offsets = [0, 0], sizes = [16, 128], strides = [1, 1]} : vector<16x256xf32> to vector<16x128xf32>
    %cst_5 = arith.constant 0.00999999977 : f32
    %8 = vector.broadcast %cst_5 : f32 to vector<16x128xf32>
    %9 = arith.mulf %8, %7 : vector<16x128xf32>
    %10 = arith.maximumf %7, %9 : vector<16x128xf32>
    %11 = vector.extract_strided_slice %6 {offsets = [0, 128], sizes = [16, 128], strides = [1, 1]} : vector<16x256xf32> to vector<16x128xf32>
    %12 = arith.truncf %10 : vector<16x128xf32> to vector<16x128xbf16>
    %c0_6 = arith.constant 0 : index
    %c0_7 = arith.constant 0 : index
    %13 = vector.load %arg4[%c0_6, %c0_7] : memref<128x128xbf16, #tpu.memory_space<vmem>>, vector<128x128xbf16>
    %cst_8 = arith.constant dense<0.000000e+00> : vector<16x128xf32>
    %14 = tpu.matmul %12, %13, %cst_8 {dimension_numbers = #tpu.dot_dimension_numbers<[1], [0], [0], [1], [0, 0, 1, 1], [], []>} : vector<16x128xbf16>, vector<128x128xbf16>, vector<16x128xf32> -> vector<16x128xf32>
    %c0_9 = arith.constant 0 : index
    %c0_10 = arith.constant 0 : index
    %15 = vector.load %arg5[%c0_9, %c0_10] : memref<1x128xf32, #tpu.memory_space<vmem>>, vector<1x128xf32>
    %16 = vector.broadcast %15 : vector<1x128xf32> to vector<16x128xf32>
    %17 = arith.addf %14, %16 : vector<16x128xf32>
    %18 = arith.addf %17, %11 : vector<16x128xf32>
    %cst_11 = arith.constant 0.00999999977 : f32
    %19 = vector.broadcast %cst_11 : f32 to vector<16x128xf32>
    %20 = arith.mulf %19, %18 : vector<16x128xf32>
    %21 = arith.maximumf %18, %20 : vector<16x128xf32>
    %c0_12 = arith.constant 0 : index
    %c0_13 = arith.constant 0 : index
    %22 = vector.load %arg6[%c0_12, %c0_13] : memref<16x128xf32, #tpu.memory_space<vmem>>, vector<16x128xf32>
    tpu.vector_store %arg6[%c0_12, %c0_13], %21 {strides = array<i32>} : memref<16x128xf32, #tpu.memory_space<vmem>>, vector<16x128xf32>,
    return
  }
  func.func @transform_0(%arg0: i32) -> (i32, i32) {
    %c0_i32 = arith.constant 0 : i32
    %c0_i32_0 = arith.constant 0 : i32
    return %arg0, %c0_i32 : i32, i32
  }
  func.func @transform_1(%arg0: i32) -> (i32, i32) {
    %c0_i32 = arith.constant 0 : i32
    %c0_i32_0 = arith.constant 0 : i32
    %c0_i32_1 = arith.constant 0 : i32
    return %c0_i32, %c0_i32_0 : i32, i32
  }
  func.func @transform_2(%arg0: i32) -> (i32, i32) {
    %c0_i32 = arith.constant 0 : i32
    %c0_i32_0 = arith.constant 0 : i32
    %c0_i32_1 = arith.constant 0 : i32
    return %c0_i32, %c0_i32_0 : i32, i32
  }
  func.func @transform_3(%arg0: i32) -> (i32, i32) {
    %c0_i32 = arith.constant 0 : i32
    %c0_i32_0 = arith.constant 0 : i32
    %c0_i32_1 = arith.constant 0 : i32
    return %c0_i32, %c0_i32_0 : i32, i32
  }
  func.func @transform_4(%arg0: i32) -> (i32, i32) {
    %c0_i32 = arith.constant 0 : i32
    %c0_i32_0 = arith.constant 0 : i32
    %c0_i32_1 = arith.constant 0 : i32
    return %c0_i32, %c0_i32_0 : i32, i32
  }
  func.func @transform_5(%arg0: i32) -> (i32, i32) {
    %c0_i32 = arith.constant 0 : i32
    %c0_i32_0 = arith.constant 0 : i32
    return %arg0, %c0_i32 : i32, i32
  }
}

module attributes {stable_mosaic.version = 11 : i64} {
  func.func @_fc_block_kernel_shortcut(%arg0: i32, %arg1: memref<16x32xf32, #tpu.memory_space<vmem>>, %arg2: memref<32x256xbf16, #tpu.memory_space<vmem>>, %arg3: memref<1x256xf32, #tpu.memory_space<vmem>>, %arg4: memref<128x128xbf16, #tpu.memory_space<vmem>>, %arg5: memref<1x128xf32, #tpu.memory_space<vmem>>, %arg6: memref<16x128xf32, #tpu.memory_space<vmem>>) attributes {dimension_semantics = [#tpu.dimension_semantics<parallel>], iteration_bounds = array<i64: 1>, scalar_prefetch = 0 : i64, scratch_operands = 0 : i64, tpu.core_type = #tpu.core_type<tc>, window_params = [{transform_indices = @transform_0, window_bounds = array<i64: 16, 32>}, {pipeline_mode = #tpu.pipeline_mode<synchronous>, transform_indices = @transform_1, window_bounds = array<i64: 32, 256>}, {pipeline_mode = #tpu.pipeline_mode<synchronous>, transform_indices = @transform_2, window_bounds = array<i64: 1, 256>}, {pipeline_mode = #tpu.pipeline_mode<synchronous>, transform_indices = @transform_3, window_bounds = array<i64: 128, 128>}, {pipeline_mode = #tpu.pipeline_mode<synchronous>, transform_indices = @transform_4, window_bounds = array<i64: 1, 128>}, {transform_indices = @transform_5, window_bounds = array<i64: 16, 128>}]} {
    %c0 = arith.constant 0 : index
    %c0_0 = arith.constant 0 : index
    %0 = vector.load %arg1[%c0, %c0_0] : memref<16x32xf32, #tpu.memory_space<vmem>>, vector<16x32xf32>
    %1 = arith.truncf %0 : vector<16x32xf32> to vector<16x32xbf16>
    %c0_1 = arith.constant 0 : index
    %c0_2 = arith.constant 0 : index
    %2 = vector.load %arg2[%c0_1, %c0_2] : memref<32x256xbf16, #tpu.memory_space<vmem>>, vector<32x256xbf16>
    %cst = arith.constant dense<0.000000e+00> : vector<16x256xf32>
    %3 = tpu.matmul %1, %2, %cst {dimension_numbers = #tpu.dot_dimension_numbers<[1], [0], [0], [1], [0, 0, 1, 1], [], []>} : vector<16x32xbf16>, vector<32x256xbf16>, vector<16x256xf32> -> vector<16x256xf32>
    %c0_3 = arith.constant 0 : index
    %c0_4 = arith.constant 0 : index
    %4 = vector.load %arg3[%c0_3, %c0_4] : memref<1x256xf32, #tpu.memory_space<vmem>>, vector<1x256xf32>
    %5 = vector.broadcast %4 : vector<1x256xf32> to vector<16x256xf32>
    %6 = arith.addf %3, %5 : vector<16x256xf32>
    %7 = vector.extract_strided_slice %6 {offsets = [0, 0], sizes = [16, 128], strides = [1, 1]} : vector<16x256xf32> to vector<16x128xf32>
    %cst_5 = arith.constant 0.00999999977 : f32
    %8 = vector.broadcast %cst_5 : f32 to vector<16x128xf32>
    %9 = arith.mulf %8, %7 : vector<16x128xf32>
    %10 = arith.maximumf %7, %9 : vector<16x128xf32>
    %11 = vector.extract_strided_slice %6 {offsets = [0, 128], sizes = [16, 128], strides = [1, 1]} : vector<16x256xf32> to vector<16x128xf32>
    %12 = arith.truncf %10 : vector<16x128xf32> to vector<16x128xbf16>
    %c0_6 = arith.constant 0 : index
    %c0_7 = arith.constant 0 : index
    %13 = vector.load %arg4[%c0_6, %c0_7] : memref<128x128xbf16, #tpu.memory_space<vmem>>, vector<128x128xbf16>
    %cst_8 = arith.constant dense<0.000000e+00> : vector<16x128xf32>
    %14 = tpu.matmul %12, %13, %cst_8 {dimension_numbers = #tpu.dot_dimension_numbers<[1], [0], [0], [1], [0, 0, 1, 1], [], []>} : vector<16x128xbf16>, vector<128x128xbf16>, vector<16x128xf32> -> vector<16x128xf32>
    %c0_9 = arith.constant 0 : index
    %c0_10 = arith.constant 0 : index
    %15 = vector.load %arg5[%c0_9, %c0_10] : memref<1x128xf32, #tpu.memory_space<vmem>>, vector<1x128xf32>
    %16 = vector.broadcast %15 : vector<1x128xf32> to vector<16x128xf32>
    %17 = arith.addf %14, %16 : vector<16x128xf32>
    %18 = arith.addf %17, %11 : vector<16x128xf32>
    %cst_11 = arith.constant 0.00999999977 : f32
    %19 = vector.broadcast %cst_11 : f32 to vector<16x128xf32>
    %20 = arith.mulf %19, %18 : vector<16x128xf32>
    %21 = arith.maximumf %18, %20 : vector<16x128xf32>
    %c0_12 = arith.constant 0 : index
    %c0_13 = arith.constant 0 : index
    %22 = vector.load %arg6[%c0_12, %c0_13] : memref<16x128xf32, #tpu.memory_space<vmem>>, vector<16x128xf32>
    tpu.vector_store %arg6[%c0_12, %c0_13], %21 {strides = array<i32>} : memref<16x128xf32, #tpu.memory_space<vmem>>, vector<16x128xf32>,
    return
  }
  func.func @transform_0(%arg0: i32) -> (i32, i32) {
    %c0_i32 = arith.constant 0 : i32
    %c0_i32_0 = arith.constant 0 : i32
    return %arg0, %c0_i32 : i32, i32
  }
  func.func @transform_1(%arg0: i32) -> (i32, i32) {
    %c0_i32 = arith.constant 0 : i32
    %c0_i32_0 = arith.constant 0 : i32
    %c0_i32_1 = arith.constant 0 : i32
    return %c0_i32, %c0_i32_0 : i32, i32
  }
  func.func @transform_2(%arg0: i32) -> (i32, i32) {
    %c0_i32 = arith.constant 0 : i32
    %c0_i32_0 = arith.constant 0 : i32
    %c0_i32_1 = arith.constant 0 : i32
    return %c0_i32, %c0_i32_0 : i32, i32
  }
  func.func @transform_3(%arg0: i32) -> (i32, i32) {
    %c0_i32 = arith.constant 0 : i32
    %c0_i32_0 = arith.constant 0 : i32
    %c0_i32_1 = arith.constant 0 : i32
    return %c0_i32, %c0_i32_0 : i32, i32
  }
  func.func @transform_4(%arg0: i32) -> (i32, i32) {
    %c0_i32 = arith.constant 0 : i32
    %c0_i32_0 = arith.constant 0 : i32
    %c0_i32_1 = arith.constant 0 : i32
    return %c0_i32, %c0_i32_0 : i32, i32
  }
  func.func @transform_5(%arg0: i32) -> (i32, i32) {
    %c0_i32 = arith.constant 0 : i32
    %c0_i32_0 = arith.constant 0 : i32
    return %arg0, %c0_i32 : i32, i32
  }
}

</mosaic_0001>

<llo_original>
// kernel: tpu_custom_call.1
$region0: #{tpu_custom_call.1}
  #allocation0 [shape = 'u32[]', space=smem, size = 0x4, offset = 0x4, fixed_abs, tag = 'smem constant byte address 0x4 - core index']
  #allocation1 [shape = 'u32[72,128]{1,0:T(1,128)}', space=vmem, size = 0x9000, scoped, tag = 'internal scratch']
  %s0 = inlined_call_operand.hbm [shape: f32[8,32], index: 0, kind: input, shape index: {}]
  %s1 = inlined_call_operand.hbm [shape: bf16[32,256], index: 1, kind: input, shape index: {}]
  %s2 = inlined_call_operand.hbm [shape: f32[1,256], index: 2, kind: input, shape index: {}]
  %s3 = inlined_call_operand.hbm [shape: bf16[128,128], index: 3, kind: input, shape index: {}]
  %s4 = inlined_call_operand.vmem [shape: f32[1,128], index: 4, kind: input, shape index: {}]
  %s5 = inlined_call_operand.hbm [shape: f32[8,128], index: 5, kind: output, shape index: {}]
  %s6 = sld [smem:[#allocation0]]
  $region46: #{tpu_custom_call.1} parent=0
    _
  %s8 = ssub.s32 1, %s6
  %s9 = scalar_select 0, %s8, %s6
  $region1: #{tpu_custom_call.1} parent=0
    #allocation2 [shape = 'u8[8192]{0}', space=vmem, size = 0x2000, scoped, tag = 'input window, operand 0, single buffered']
    #allocation3 [shape = 's32[1]{0}', space=sflag, size = 0x4, scoped, tag = 'scoped memory for tpu_custom_call.1']
    #allocation4 [shape = 's32[1]{0}', space=sflag, size = 0x4, scoped, tag = 'scoped memory for tpu_custom_call.1']
    #allocation5 [shape = 'u8[16384]{0}', space=vmem, size = 0x4000, scoped, tag = 'input window, operand 1, single buffered']
    #allocation6 [shape = 's32[1]{0}', space=sflag, size = 0x4, scoped, tag = 'scoped memory for tpu_custom_call.1']
    #allocation7 [shape = 'u8[1024]{0}', space=vmem, size = 0x400, scoped, tag = 'input window, operand 2, single buffered']
    #allocation8 [shape = 'u8[32768]{0}', space=vmem, size = 0x8000, scoped, tag = 'input window, operand 3, single buffered']
    #allocation9 [shape = 's32[1]{0}', space=sflag, size = 0x4, scoped, tag = 'scoped memory for tpu_custom_call.1']
    #allocation10 [shape = 'u8[8192]{0}', space=vmem, size = 0x2000, scoped, tag = 'output window, operand 0, single buffered']
    %10 = vsyncpa [#allocation3], 0
    %11 = vsyncpa [#allocation6], 0
    %12 = vsyncpa [#allocation9], 0
    %13 = vsyncpa [#allocation4], 0
    // Predicated region
    $region2: #{tpu_custom_call.1} parent=1 // pred_check
      _
    $region3: #{tpu_custom_call.1} parent=1 // pred_check_branch
      %15 = sbr.rel (0) target = $region5
    $region4: #{tpu_custom_call.1} parent=1 // pred_region
      %17 = vsyncadd [#allocation3], 128
      %s18 = sshll.u32 %s0, 4
      %s19 = int_to_ptr.hbm [resolvable:$true] %s18
      %s20 = sshll.u32 [#allocation2], 4
      %s21 = int_to_ptr.vmem [resolvable:$true] %s20
      %26 = dma.hbm_to_vmem [thread:$0]  %s19, 128, %s21, [#allocation3], 128, 128, 8
    $region5: #{tpu_custom_call.1} parent=1 // pred_fallthru
      _
    // Predicated region
    $region6: #{tpu_custom_call.1} parent=1 // pred_check
      _
    $region7: #{tpu_custom_call.1} parent=1 // pred_check_branch
      %28 = sbr.rel (0) target = $region9
    $region8: #{tpu_custom_call.1} parent=1 // pred_region
      %30 = vsyncadd [#allocation6], 0
      %s31 = sshll.u32 %s1, 4
      %s32 = int_to_ptr.hbm [resolvable:$true] %s31
      %s33 = sshll.u32 [#allocation5], 4
      %s34 = int_to_ptr.vmem [resolvable:$true] %s33
      %39 = dma.hbm_to_vmem [thread:$0]  %s32, 512, %s34, [#allocation6], 128, 128, 8
    $region9: #{tpu_custom_call.1} parent=1 // pred_fallthru
      _
    // Predicated region
    $region10: #{tpu_custom_call.1} parent=1 // pred_check
      _
    $region11: #{tpu_custom_call.1} parent=1 // pred_check_branch
      %41 = sbr.rel (0) target = $region13
    $region12: #{tpu_custom_call.1} parent=1 // pred_region
      %43 = vsyncadd [#allocation6], 0
      %s45 = sshll.u32 %s2, 4
      %s46 = int_to_ptr.hbm [resolvable:$true] %s45
      %s47 = sshll.u32 [#allocation7], 4
      %s48 = int_to_ptr.vmem [resolvable:$true] %s47
      %50 = dma.hbm_to_vmem [thread:$0]  %s46, 32, %s48, [#allocation6]
    $region13: #{tpu_custom_call.1} parent=1 // pred_fallthru
      _
    // Predicated region
    $region14: #{tpu_custom_call.1} parent=1 // pred_check
      _
    $region15: #{tpu_custom_call.1} parent=1 // pred_check_branch
      %52 = sbr.rel (0) target = $region17
    $region16: #{tpu_custom_call.1} parent=1 // pred_region
      %54 = vsyncadd [#allocation9], 0
      %s55 = sshll.u32 %s3, 4
      %s56 = int_to_ptr.hbm [resolvable:$true] %s55
      %s57 = sshll.u32 [#allocation8], 4
      %s58 = int_to_ptr.vmem [resolvable:$true] %s57
      %63 = dma.hbm_to_vmem [thread:$0]  %s56, 1024, %s58, [#allocation9], 64, 64, 4
    $region17: #{tpu_custom_call.1} parent=1 // pred_fallthru
      _
    // Predicated region
    $region18: #{tpu_custom_call.1} parent=1 // pred_check
      _
    $region19: #{tpu_custom_call.1} parent=1 // pred_check_branch
      %65 = sbr.rel (0) target = $region21
    $region20: #{tpu_custom_call.1} parent=1 // pred_region
      _
    $region21: #{tpu_custom_call.1} parent=1 // pred_fallthru
      _
    // Predicated region
    $region22: #{tpu_custom_call.1} parent=1 // pred_check
      _
    $region23: #{tpu_custom_call.1} parent=1 // pred_check_branch
      %67 = sbr.rel (0) target = $region25
    $region24: #{tpu_custom_call.1} parent=1 // pred_region
      %69 = dma.done [#allocation3], 256
    $region25: #{tpu_custom_call.1} parent=1 // pred_fallthru
      _
    // Predicated region
    $region26: #{tpu_custom_call.1} parent=1 // pred_check
      _
    $region27: #{tpu_custom_call.1} parent=1 // pred_check_branch
      %71 = sbr.rel (0) target = $region29
    $region28: #{tpu_custom_call.1} parent=1 // pred_region
      %73 = dma.done [#allocation6], 512
    $region29: #{tpu_custom_call.1} parent=1 // pred_fallthru
      _
    // Predicated region
    $region30: #{tpu_custom_call.1} parent=1 // pred_check
      _
    $region31: #{tpu_custom_call.1} parent=1 // pred_check_branch
      %75 = sbr.rel (0) target = $region33
    $region32: #{tpu_custom_call.1} parent=1 // pred_region
      %77 = dma.done [#allocation6], 32
    $region33: #{tpu_custom_call.1} parent=1 // pred_fallthru
      _
    // Predicated region
    $region34: #{tpu_custom_call.1} parent=1 // pred_check
      _
    $region35: #{tpu_custom_call.1} parent=1 // pred_check_branch
      %79 = sbr.rel (0) target = $region37
    $region36: #{tpu_custom_call.1} parent=1 // pred_region
      %81 = dma.done [#allocation9], 1024
    $region37: #{tpu_custom_call.1} parent=1 // pred_fallthru
      _
    %v83 = vld [vmem:[#allocation2] sm:$0xff]
    %v84 = vld [vmem:[#allocation2 + $0x8] sm:$0xff]
    %v85 = vpack.c.bf16 %v84, %v83
    %v86 = vld [vmem:[#allocation5] sm:$0xff]
    %v87 = vld [vmem:[#allocation5 + $0x8] sm:$0xff]
    %v88 = vld [vmem:[#allocation5 + $0x10] sm:$0xff]
    %v89 = vld [vmem:[#allocation5 + $0x18] sm:$0xff]
    %v90 = vld [vmem:[#allocation7] sm:$0x3]
    %v92 = vperm.slane %v90, 0
    %v93 = vperm.slane %v90, 1
    %v100 = vunpack.c.l.b16 %v86
    %v101 = vunpack.c.h.b16 %v86
    %v102 = vunpack.c.l.b16 %v87
    %v103 = vunpack.c.h.b16 %v87
    %v104 = vunpack.c.l.b16 %v88
    %v105 = vunpack.c.h.b16 %v88
    %v106 = vunpack.c.l.b16 %v89
    %v107 = vunpack.c.h.b16 %v89
    %v108 = vpack.c.b16 %v102, %v100
    %v109 = vpack.c.b16 %v103, %v101
    %v110 = vpack.c.b16 %v106, %v104
    %v111 = vpack.c.b16 %v107, %v105
    %vm116 = vcmask 261120
    %v118 = vsel %vm116, %v85, 0
    %120 = vmatpush.bf16.msra.mxu0 0
    %121 = vmatpush.bf16.msra.mxu0 0
    %122 = vmatpush.bf16.msra.mxu0 0
    %123 = vmatpush.bf16.msra.mxu0 0
    %124 = vmatpush.bf16.msra.mxu0 0
    %125 = vmatpush.bf16.msra.mxu0 0
    %126 = vmatpush.bf16.msra.mxu0 %v110
    %127 = vmatpush.bf16.msra.mxu0 %v108
    %128 = vmatmul.bf16.gmra.mxu0 %v118
    %v129 = vpop.f32.mrf.mxu0
    %v130 = vadd.f32 %v92, %v129
    %v131 = vpop.f32.mrf.mxu0
    %v132 = vadd.f32 %v92, %v131
    %133 = vdwg.mxu0
    %134 = vmatpush.bf16.msra.mxu0 0
    %135 = vmatpush.bf16.msra.mxu0 0
    %136 = vmatpush.bf16.msra.mxu0 0
    %137 = vmatpush.bf16.msra.mxu0 0
    %138 = vmatpush.bf16.msra.mxu0 0
    %139 = vmatpush.bf16.msra.mxu0 0
    %140 = vmatpush.bf16.msra.mxu0 %v111
    %141 = vmatpush.bf16.msra.mxu0 %v109
    %142 = vmatmul.bf16.gmra.mxu0 %v118
    %v143 = vpop.f32.mrf.mxu0
    %v144 = vadd.f32 %v93, %v143
    %v145 = vpop.f32.mrf.mxu0
    %v146 = vadd.f32 %v93, %v145
    %147 = vdwg.mxu0
    %v148 = vmul.f32 %v130, 0.01
    %v149 = vmul.f32 %v132, 0.01
    %v150 = vmax.f32 %v130, %v148
    %v151 = vmax.f32 %v132, %v149
    %v152 = vpack.c.bf16 %v151, %v150
    %v153 = vld [vmem:[#allocation8] sm:$0xf]
    %v154 = vld [vmem:[#allocation8 + $0x4] sm:$0xf]
    %v155 = vld [vmem:[#allocation8 + $0x8] sm:$0xf]
    %v156 = vld [vmem:[#allocation8 + $0xc] sm:$0xf]
    %v157 = vld [vmem:[#allocation8 + $0x10] sm:$0xf]
    %v158 = vld [vmem:[#allocation8 + $0x14] sm:$0xf]
    %v159 = vld [vmem:[#allocation8 + $0x18] sm:$0xf]
    %v160 = vld [vmem:[#allocation8 + $0x1c] sm:$0xf]
    %v161 = vld [vmem:[#allocation8 + $0x20] sm:$0xf]
    %v162 = vld [vmem:[#allocation8 + $0x24] sm:$0xf]
    %v163 = vld [vmem:[#allocation8 + $0x28] sm:$0xf]
    %v164 = vld [vmem:[#allocation8 + $0x2c] sm:$0xf]
    %v165 = vld [vmem:[#allocation8 + $0x30] sm:$0xf]
    %v166 = vld [vmem:[#allocation8 + $0x34] sm:$0xf]
    %v167 = vld [vmem:[#allocation8 + $0x38] sm:$0xf]
    %v168 = vld [vmem:[#allocation8 + $0x3c] sm:$0xf]
    %v169 = vld [vmem:[%s4] sm:$0x1]
    %v171 = vperm.slane %v169, 0
    %v189 = vunpack.c.l.b16 %v153
    %v190 = vunpack.c.l.b16 %v154
    %v191 = vunpack.c.l.b16 %v155
    %v192 = vunpack.c.l.b16 %v156
    %v193 = vunpack.c.l.b16 %v157
    %v194 = vunpack.c.l.b16 %v158
    %v195 = vunpack.c.l.b16 %v159
    %v196 = vunpack.c.l.b16 %v160
    %v197 = vunpack.c.l.b16 %v161
    %v198 = vunpack.c.l.b16 %v162
    %v199 = vunpack.c.l.b16 %v163
    %v200 = vunpack.c.l.b16 %v164
    %v201 = vunpack.c.l.b16 %v165
    %v202 = vunpack.c.l.b16 %v166
    %v203 = vunpack.c.l.b16 %v167
    %v204 = vunpack.c.l.b16 %v168
    %v205 = vpack.c.b16 %v190, %v189
    %v206 = vpack.c.b16 %v192, %v191
    %v207 = vpack.c.b16 %v194, %v193
    %v208 = vpack.c.b16 %v196, %v195
    %v209 = vpack.c.b16 %v198, %v197
    %v210 = vpack.c.b16 %v200, %v199
    %v211 = vpack.c.b16 %v202, %v201
    %v212 = vpack.c.b16 %v204, %v203
    %221 = vmatpush.bf16.msra.mxu0 %v212
    %222 = vmatpush.bf16.msra.mxu0 %v211
    %223 = vmatpush.bf16.msra.mxu0 %v210
    %224 = vmatpush.bf16.msra.mxu0 %v209
    %225 = vmatpush.bf16.msra.mxu0 %v208
    %226 = vmatpush.bf16.msra.mxu0 %v207
    %227 = vmatpush.bf16.msra.mxu0 %v206
    %228 = vmatpush.bf16.msra.mxu0 %v205
    %229 = vmatmul.bf16.gmra.mxu0 %v152
    %v230 = vpop.f32.mrf.mxu0
    %v231 = vadd.f32 %v171, %v230
    %v232 = vpop.f32.mrf.mxu0
    %v233 = vadd.f32 %v171, %v232
    %234 = vdwg.mxu0
    %v235 = vadd.f32 %v231, %v144
    %v236 = vadd.f32 %v233, %v146
    %v237 = vmul.f32 %v235, 0.01
    %v238 = vmul.f32 %v236, 0.01
    %v239 = vmax.f32 %v235, %v237
    %v240 = vmax.f32 %v236, %v238
    %241 = vst [vmem:[#allocation10] sm:$0xff] %v239
    %242 = vst [vmem:[#allocation10 + $0x8] sm:$0xff] %v240
    // Predicated region
    $region38: #{tpu_custom_call.1} parent=1 // pred_check
      _
    $region39: #{tpu_custom_call.1} parent=1 // pred_check_branch
      %244 = sbr.rel (0) target = $region41
    $region40: #{tpu_custom_call.1} parent=1 // pred_region
      %246 = vsyncadd [#allocation4], 128
      %s247 = sshll.u32 [#allocation10], 4
      %s248 = int_to_ptr.vmem [resolvable:$true] %s247
      %s249 = sshll.u32 %s5, 4
      %s250 = int_to_ptr.hbm [resolvable:$true] %s249
      %255 = dma.vmem_to_hbm [thread:$0]  %s248, 128, %s250, [#allocation4], 128, 128, 8
    $region41: #{tpu_custom_call.1} parent=1 // pred_fallthru
      _
    // Predicated region
    $region42: #{tpu_custom_call.1} parent=1 // pred_check
      _
    $region43: #{tpu_custom_call.1} parent=1 // pred_check_branch
      %257 = sbr.rel (0) target = $region45
    $region44: #{tpu_custom_call.1} parent=1 // pred_region
      %259 = dma.done [#allocation4], 256
    $region45: #{tpu_custom_call.1} parent=1 // pred_fallthru
      _
    %260 = vsyncpa [#allocation3], 1
    %261 = vsyncpa [#allocation6], 1
    %262 = vsyncpa [#allocation9], 1
    %263 = vsyncpa [#allocation4], 1

// kernel: tpu_custom_call.1
$region0: #{tpu_custom_call.1}
  #allocation0 [shape = 'u32[]', space=smem, size = 0x4, offset = 0x4, fixed_abs, tag = 'smem constant byte address 0x4 - core index']
  #allocation1 [shape = 'u32[72,128]{1,0:T(1,128)}', space=vmem, size = 0x9000, scoped, tag = 'internal scratch']
  %s0 = inlined_call_operand.hbm [shape: f32[8,32], index: 0, kind: input, shape index: {}]
  %s1 = inlined_call_operand.hbm [shape: bf16[32,256], index: 1, kind: input, shape index: {}]
  %s2 = inlined_call_operand.hbm [shape: f32[1,256], index: 2, kind: input, shape index: {}]
  %s3 = inlined_call_operand.hbm [shape: bf16[128,128], index: 3, kind: input, shape index: {}]
  %s4 = inlined_call_operand.vmem [shape: f32[1,128], index: 4, kind: input, shape index: {}]
  %s5 = inlined_call_operand.hbm [shape: f32[8,128], index: 5, kind: output, shape index: {}]
  %s6 = sld [smem:[#allocation0]]
  $region46: #{tpu_custom_call.1} parent=0
    _
  %s8 = ssub.s32 1, %s6
  %s9 = scalar_select 0, %s8, %s6
  $region1: #{tpu_custom_call.1} parent=0
    #allocation2 [shape = 'u8[8192]{0}', space=vmem, size = 0x2000, scoped, tag = 'input window, operand 0, single buffered']
    #allocation3 [shape = 's32[1]{0}', space=sflag, size = 0x4, scoped, tag = 'scoped memory for tpu_custom_call.1']
    #allocation4 [shape = 's32[1]{0}', space=sflag, size = 0x4, scoped, tag = 'scoped memory for tpu_custom_call.1']
    #allocation5 [shape = 'u8[16384]{0}', space=vmem, size = 0x4000, scoped, tag = 'input window, operand 1, single buffered']
    #allocation6 [shape = 's32[1]{0}', space=sflag, size = 0x4, scoped, tag = 'scoped memory for tpu_custom_call.1']
    #allocation7 [shape = 'u8[1024]{0}', space=vmem, size = 0x400, scoped, tag = 'input window, operand 2, single buffered']
    #allocation8 [shape = 'u8[32768]{0}', space=vmem, size = 0x8000, scoped, tag = 'input window, operand 3, single buffered']
    #allocation9 [shape = 's32[1]{0}', space=sflag, size = 0x4, scoped, tag = 'scoped memory for tpu_custom_call.1']
    #allocation10 [shape = 'u8[8192]{0}', space=vmem, size = 0x2000, scoped, tag = 'output window, operand 0, single buffered']
    %10 = vsyncpa [#allocation3], 0
    %11 = vsyncpa [#allocation6], 0
    %12 = vsyncpa [#allocation9], 0
    %13 = vsyncpa [#allocation4], 0
    // Predicated region
    $region2: #{tpu_custom_call.1} parent=1 // pred_check
      _
    $region3: #{tpu_custom_call.1} parent=1 // pred_check_branch
      %15 = sbr.rel (0) target = $region5
    $region4: #{tpu_custom_call.1} parent=1 // pred_region
      %17 = vsyncadd [#allocation3], 128
      %s18 = sshll.u32 %s0, 4
      %s19 = int_to_ptr.hbm [resolvable:$true] %s18
      %s20 = sshll.u32 [#allocation2], 4
      %s21 = int_to_ptr.vmem [resolvable:$true] %s20
      %26 = dma.hbm_to_vmem [thread:$0]  %s19, 128, %s21, [#allocation3], 128, 128, 8
    $region5: #{tpu_custom_call.1} parent=1 // pred_fallthru
      _
    // Predicated region
    $region6: #{tpu_custom_call.1} parent=1 // pred_check
      _
    $region7: #{tpu_custom_call.1} parent=1 // pred_check_branch
      %28 = sbr.rel (0) target = $region9
    $region8: #{tpu_custom_call.1} parent=1 // pred_region
      %30 = vsyncadd [#allocation6], 0
      %s31 = sshll.u32 %s1, 4
      %s32 = int_to_ptr.hbm [resolvable:$true] %s31
      %s33 = sshll.u32 [#allocation5], 4
      %s34 = int_to_ptr.vmem [resolvable:$true] %s33
      %39 = dma.hbm_to_vmem [thread:$0]  %s32, 512, %s34, [#allocation6], 128, 128, 8
    $region9: #{tpu_custom_call.1} parent=1 // pred_fallthru
      _
    // Predicated region
    $region10: #{tpu_custom_call.1} parent=1 // pred_check
      _
    $region11: #{tpu_custom_call.1} parent=1 // pred_check_branch
      %41 = sbr.rel (0) target = $region13
    $region12: #{tpu_custom_call.1} parent=1 // pred_region
      %43 = vsyncadd [#allocation6], 0
      %s45 = sshll.u32 %s2, 4
      %s46 = int_to_ptr.hbm [resolvable:$true] %s45
      %s47 = sshll.u32 [#allocation7], 4
      %s48 = int_to_ptr.vmem [resolvable:$true] %s47
      %50 = dma.hbm_to_vmem [thread:$0]  %s46, 32, %s48, [#allocation6]
    $region13: #{tpu_custom_call.1} parent=1 // pred_fallthru
      _
    // Predicated region
    $region14: #{tpu_custom_call.1} parent=1 // pred_check
      _
    $region15: #{tpu_custom_call.1} parent=1 // pred_check_branch
      %52 = sbr.rel (0) target = $region17
    $region16: #{tpu_custom_call.1} parent=1 // pred_region
      %54 = vsyncadd [#allocation9], 0
      %s55 = sshll.u32 %s3, 4
      %s56 = int_to_ptr.hbm [resolvable:$true] %s55
      %s57 = sshll.u32 [#allocation8], 4
      %s58 = int_to_ptr.vmem [resolvable:$true] %s57
      %63 = dma.hbm_to_vmem [thread:$0]  %s56, 1024, %s58, [#allocation9], 64, 64, 4
    $region17: #{tpu_custom_call.1} parent=1 // pred_fallthru
      _
    // Predicated region
    $region18: #{tpu_custom_call.1} parent=1 // pred_check
      _
    $region19: #{tpu_custom_call.1} parent=1 // pred_check_branch
      %65 = sbr.rel (0) target = $region21
    $region20: #{tpu_custom_call.1} parent=1 // pred_region
      _
    $region21: #{tpu_custom_call.1} parent=1 // pred_fallthru
      _
    // Predicated region
    $region22: #{tpu_custom_call.1} parent=1 // pred_check
      _
    $region23: #{tpu_custom_call.1} parent=1 // pred_check_branch
      %67 = sbr.rel (0) target = $region25
    $region24: #{tpu_custom_call.1} parent=1 // pred_region
      %69 = dma.done [#allocation3], 256
    $region25: #{tpu_custom_call.1} parent=1 // pred_fallthru
      _
    // Predicated region
    $region26: #{tpu_custom_call.1} parent=1 // pred_check
      _
    $region27: #{tpu_custom_call.1} parent=1 // pred_check_branch
      %71 = sbr.rel (0) target = $region29
    $region28: #{tpu_custom_call.1} parent=1 // pred_region
      %73 = dma.done [#allocation6], 512
    $region29: #{tpu_custom_call.1} parent=1 // pred_fallthru
      _
    // Predicated region
    $region30: #{tpu_custom_call.1} parent=1 // pred_check
      _
    $region31: #{tpu_custom_call.1} parent=1 // pred_check_branch
      %75 = sbr.rel (0) target = $region33
    $region32: #{tpu_custom_call.1} parent=1 // pred_region
      %77 = dma.done [#allocation6], 32
    $region33: #{tpu_custom_call.1} parent=1 // pred_fallthru
      _
    // Predicated region
    $region34: #{tpu_custom_call.1} parent=1 // pred_check
      _
    $region35: #{tpu_custom_call.1} parent=1 // pred_check_branch
      %79 = sbr.rel (0) target = $region37
    $region36: #{tpu_custom_call.1} parent=1 // pred_region
      %81 = dma.done [#allocation9], 1024
    $region37: #{tpu_custom_call.1} parent=1 // pred_fallthru
      _
    %v83 = vld [vmem:[#allocation2] sm:$0xff]
    %v84 = vld [vmem:[#allocation2 + $0x8] sm:$0xff]
    %v85 = vpack.c.bf16 %v84, %v83
    %v86 = vld [vmem:[#allocation5] sm:$0xff]
    %v87 = vld [vmem:[#allocation5 + $0x8] sm:$0xff]
    %v88 = vld [vmem:[#allocation5 + $0x10] sm:$0xff]
    %v89 = vld [vmem:[#allocation5 + $0x18] sm:$0xff]
    %v90 = vld [vmem:[#allocation7] sm:$0x3]
    %v92 = vperm.slane %v90, 0
    %v93 = vperm.slane %v90, 1
    %v100 = vunpack.c.l.b16 %v86
    %v101 = vunpack.c.h.b16 %v86
    %v102 = vunpack.c.l.b16 %v87
    %v103 = vunpack.c.h.b16 %v87
    %v104 = vunpack.c.l.b16 %v88
    %v105 = vunpack.c.h.b16 %v88
    %v106 = vunpack.c.l.b16 %v89
    %v107 = vunpack.c.h.b16 %v89
    %v108 = vpack.c.b16 %v102, %v100
    %v109 = vpack.c.b16 %v103, %v101
    %v110 = vpack.c.b16 %v106, %v104
    %v111 = vpack.c.b16 %v107, %v105
    %vm116 = vcmask 261120
    %v118 = vsel %vm116, %v85, 0
    %120 = vmatpush.bf16.msra.mxu0 0
    %121 = vmatpush.bf16.msra.mxu0 0
    %122 = vmatpush.bf16.msra.mxu0 0
    %123 = vmatpush.bf16.msra.mxu0 0
    %124 = vmatpush.bf16.msra.mxu0 0
    %125 = vmatpush.bf16.msra.mxu0 0
    %126 = vmatpush.bf16.msra.mxu0 %v110
    %127 = vmatpush.bf16.msra.mxu0 %v108
    %128 = vmatmul.bf16.gmra.mxu0 %v118
    %v129 = vpop.f32.mrf.mxu0
    %v130 = vadd.f32 %v92, %v129
    %v131 = vpop.f32.mrf.mxu0
    %v132 = vadd.f32 %v92, %v131
    %133 = vdwg.mxu0
    %134 = vmatpush.bf16.msra.mxu0 0
    %135 = vmatpush.bf16.msra.mxu0 0
    %136 = vmatpush.bf16.msra.mxu0 0
    %137 = vmatpush.bf16.msra.mxu0 0
    %138 = vmatpush.bf16.msra.mxu0 0
    %139 = vmatpush.bf16.msra.mxu0 0
    %140 = vmatpush.bf16.msra.mxu0 %v111
    %141 = vmatpush.bf16.msra.mxu0 %v109
    %142 = vmatmul.bf16.gmra.mxu0 %v118
    %v143 = vpop.f32.mrf.mxu0
    %v144 = vadd.f32 %v93, %v143
    %v145 = vpop.f32.mrf.mxu0
    %v146 = vadd.f32 %v93, %v145
    %147 = vdwg.mxu0
    %v148 = vmul.f32 %v130, 0.01
    %v149 = vmul.f32 %v132, 0.01
    %v150 = vmax.f32 %v130, %v148
    %v151 = vmax.f32 %v132, %v149
    %v152 = vpack.c.bf16 %v151, %v150
    %v153 = vld [vmem:[#allocation8] sm:$0xf]
    %v154 = vld [vmem:[#allocation8 + $0x4] sm:$0xf]
    %v155 = vld [vmem:[#allocation8 + $0x8] sm:$0xf]
    %v156 = vld [vmem:[#allocation8 + $0xc] sm:$0xf]
    %v157 = vld [vmem:[#allocation8 + $0x10] sm:$0xf]
    %v158 = vld [vmem:[#allocation8 + $0x14] sm:$0xf]
    %v159 = vld [vmem:[#allocation8 + $0x18] sm:$0xf]
    %v160 = vld [vmem:[#allocation8 + $0x1c] sm:$0xf]
    %v161 = vld [vmem:[#allocation8 + $0x20] sm:$0xf]
    %v162 = vld [vmem:[#allocation8 + $0x24] sm:$0xf]
    %v163 = vld [vmem:[#allocation8 + $0x28] sm:$0xf]
    %v164 = vld [vmem:[#allocation8 + $0x2c] sm:$0xf]
    %v165 = vld [vmem:[#allocation8 + $0x30] sm:$0xf]
    %v166 = vld [vmem:[#allocation8 + $0x34] sm:$0xf]
    %v167 = vld [vmem:[#allocation8 + $0x38] sm:$0xf]
    %v168 = vld [vmem:[#allocation8 + $0x3c] sm:$0xf]
    %v169 = vld [vmem:[%s4] sm:$0x1]
    %v171 = vperm.slane %v169, 0
    %v189 = vunpack.c.l.b16 %v153
    %v190 = vunpack.c.l.b16 %v154
    %v191 = vunpack.c.l.b16 %v155
    %v192 = vunpack.c.l.b16 %v156
    %v193 = vunpack.c.l.b16 %v157
    %v194 = vunpack.c.l.b16 %v158
    %v195 = vunpack.c.l.b16 %v159
    %v196 = vunpack.c.l.b16 %v160
    %v197 = vunpack.c.l.b16 %v161
    %v198 = vunpack.c.l.b16 %v162
    %v199 = vunpack.c.l.b16 %v163
    %v200 = vunpack.c.l.b16 %v164
    %v201 = vunpack.c.l.b16 %v165
    %v202 = vunpack.c.l.b16 %v166
    %v203 = vunpack.c.l.b16 %v167
    %v204 = vunpack.c.l.b16 %v168
    %v205 = vpack.c.b16 %v190, %v189
    %v206 = vpack.c.b16 %v192, %v191
    %v207 = vpack.c.b16 %v194, %v193
    %v208 = vpack.c.b16 %v196, %v195
    %v209 = vpack.c.b16 %v198, %v197
    %v210 = vpack.c.b16 %v200, %v199
    %v211 = vpack.c.b16 %v202, %v201
    %v212 = vpack.c.b16 %v204, %v203
    %221 = vmatpush.bf16.msra.mxu0 %v212
    %222 = vmatpush.bf16.msra.mxu0 %v211
    %223 = vmatpush.bf16.msra.mxu0 %v210
    %224 = vmatpush.bf16.msra.mxu0 %v209
    %225 = vmatpush.bf16.msra.mxu0 %v208
    %226 = vmatpush.bf16.msra.mxu0 %v207
    %227 = vmatpush.bf16.msra.mxu0 %v206
    %228 = vmatpush.bf16.msra.mxu0 %v205
    %229 = vmatmul.bf16.gmra.mxu0 %v152
    %v230 = vpop.f32.mrf.mxu0
    %v231 = vadd.f32 %v171, %v230
    %v232 = vpop.f32.mrf.mxu0
    %v233 = vadd.f32 %v171, %v232
    %234 = vdwg.mxu0
    %v235 = vadd.f32 %v231, %v144
    %v236 = vadd.f32 %v233, %v146
    %v237 = vmul.f32 %v235, 0.01
    %v238 = vmul.f32 %v236, 0.01
    %v239 = vmax.f32 %v235, %v237
    %v240 = vmax.f32 %v236, %v238
    %241 = vst [vmem:[#allocation10] sm:$0xff] %v239
    %242 = vst [vmem:[#allocation10 + $0x8] sm:$0xff] %v240
    // Predicated region
    $region38: #{tpu_custom_call.1} parent=1 // pred_check
      _
    $region39: #{tpu_custom_call.1} parent=1 // pred_check_branch
      %244 = sbr.rel (0) target = $region41
    $region40: #{tpu_custom_call.1} parent=1 // pred_region
      %246 = vsyncadd [#allocation4], 128
      %s247 = sshll.u32 [#allocation10], 4
      %s248 = int_to_ptr.vmem [resolvable:$true] %s247
      %s249 = sshll.u32 %s5, 4
      %s250 = int_to_ptr.hbm [resolvable:$true] %s249
      %255 = dma.vmem_to_hbm [thread:$0]  %s248, 128, %s250, [#allocation4], 128, 128, 8
    $region41: #{tpu_custom_call.1} parent=1 // pred_fallthru
      _
    // Predicated region
    $region42: #{tpu_custom_call.1} parent=1 // pred_check
      _
    $region43: #{tpu_custom_call.1} parent=1 // pred_check_branch
      %257 = sbr.rel (0) target = $region45
    $region44: #{tpu_custom_call.1} parent=1 // pred_region
      %259 = dma.done [#allocation4], 256
    $region45: #{tpu_custom_call.1} parent=1 // pred_fallthru
      _
    %260 = vsyncpa [#allocation3], 1
    %261 = vsyncpa [#allocation6], 1
    %262 = vsyncpa [#allocation9], 1
    %263 = vsyncpa [#allocation4], 1

</llo_original>
